<compile_context>
chip_gen: v7x
topology: tpu7x:2x2x1
jax: 0.10.0
libtpu: 0.0.40
codegen_flags: <defaults>
</compile_context>

<pallas_src>
import functools

import jax
import jax.numpy as jnp
from jax.experimental import pallas as pl
from jax.experimental.pallas import tpu as pltpu


def _gcn_fused_kernel(bt_ref, xt_ref, y_ref):
    """Yt[K*V, TM] = Bt[K*V, V] @ Xt[V, TM] (all supports/orders + identity fused).

    Operands are consumed in their native dtype (bf16 goes straight to the MXU);
    accumulation is f32, cast on store.
    """
    y = jnp.dot(bt_ref[...], xt_ref[...], preferred_element_type=jnp.float32)
    y_ref[...] = y.astype(y_ref.dtype)


def _round_up(a, b):
    return ((a + b - 1) // b) * b


def _round_down(a, b):
    return (a // b) * b


@functools.partial(jax.jit, static_argnames=("order", "stream_dtype"))
def gcn_forward(x, supports, order=2, stream_dtype=None):
    """Pallas implementation of gcn.forward.

    x            : (N, C, V, L)
    supports     : tuple of (V, V) adjacency matrices
    stream_dtype : optional dtype (e.g. jnp.bfloat16) for the kernel's HBM I/O;
                   None streams in the input dtype (exact).
    returns      : (N, C * (1 + len(supports) * order), V, L), dtype of x
    """
    N, C, V, L = x.shape
    M = N * C * L
    in_dtype = x.dtype
    io_dtype = jnp.dtype(stream_dtype) if stream_dtype is not None else jnp.dtype(in_dtype)
    itemsize = io_dtype.itemsize

    # --- fused diffusion-basis matrix: [I, A1, A1@A1, A2, A2@A2, ...] ------------
    # Powers are built in f32 (avoids chained-downcast drift for low-precision
    # supports), then cast once to the streaming dtype.
    terms = [jnp.eye(V, dtype=jnp.float32)]
    for a in supports:
        a32 = a.astype(jnp.float32)
        t = a32
        terms.append(t)
        for _ in range(2, order + 1):
            t = jnp.dot(t, a32, preferred_element_type=jnp.float32)  # x@a@a == x@(a@a)
            terms.append(t)
    K = len(terms)                      # 1 + len(supports) * order
    KV = K * V
    # Yt[k*V + w, m] = sum_v T_k[v, w] * Xt[v, m]  ->  Bt row-block k is T_k^T.
    bt_all = jnp.concatenate([t.T for t in terms], axis=0).astype(io_dtype)   # (K*V, V)

    # --- lane-dense transposed activations: (N,C,V,L) -> (V, M), M on lanes ------
    xt = jnp.transpose(x, (2, 0, 1, 3)).reshape(V, M).astype(io_dtype)

    # --- budget-driven, generation-aware tile size --------------------------------
    VMEM_BUDGET = 12 * 1024 * 1024       # fits v5e's 16 MiB scoped default w/ headroom
    TARGET_TM = 8192                     # >=4 MiB/step on v7x to amortize step overhead
    bytes_per_lane = 2 * (V + KV) * itemsize          # double-buffered X + Y tiles
    tm_budget = _round_down(max(VMEM_BUDGET // bytes_per_lane, 128), 128)
    TM = max(128, min(TARGET_TM, tm_budget))

    M128 = _round_up(M, 128)
    if M128 >= 256:
        # Keep >=2 tiles so the "parallel" axis can shard across v7x's two TCs.
        TM = min(TM, max(128, _round_down(M128 // 2, 128)))
    TM = min(TM, M128)

    # Pad M so every grid step is a full, unmasked, uniform-size tile (no vst.msk tail).
    M_pad = _round_up(M128, TM)
    if M_pad != M:
        xt = jnp.pad(xt, ((0, 0), (0, M_pad - M)))
    grid = (M_pad // TM,)

    footprint = 2 * (V + KV) * TM * itemsize + KV * V * itemsize   # Bt single-buffered
    vmem_limit = int(min(max(footprint + (4 << 20), 16 << 20), 48 << 20))

    cost = pl.CostEstimate(
        flops=2 * KV * V * M_pad,
        transcendentals=0,
        bytes_accessed=(V * M_pad + KV * V + KV * M_pad) * itemsize,
    )

    yt = pl.pallas_call(
        _gcn_fused_kernel,
        out_shape=jax.ShapeDtypeStruct((KV, M_pad), io_dtype),
        grid=grid,
        in_specs=[
            # Bt: tiny, constant index_map -> single-buffered, resident across the grid.
            pl.BlockSpec((KV, V), lambda i: (0, 0), pipeline_mode=pl.Buffered(1)),
            # Xt tile: lane-dense load, double-buffered by the pipeline.
            pl.BlockSpec((V, TM), lambda i: (0, i)),
        ],
        out_specs=pl.BlockSpec((KV, TM), lambda i: (0, i)),   # lane-dense store
        compiler_params=pltpu.CompilerParams(
            dimension_semantics=("parallel",),   # shard M tiles across TCs (v7x)
            vmem_limit_bytes=vmem_limit,
        ),
        cost_estimate=cost,
    )(bt_all, xt)

    # (K*V, M) -> (K, V, N, C, L) -> (N, K, C, V, L) -> (N, K*C, V, L)
    y = yt[:, :M].reshape(K, V, N, C, L)
    h = jnp.transpose(y, (2, 0, 3, 1, 4)).reshape(N, K * C, V, L)
    if h.dtype != in_dtype:
        h = h.astype(in_dtype)
    return h


def gcn_reference(x, supports, order=2):
    """Pure-JAX reference mirroring the PyTorch module exactly."""
    out = [x]
    for a in supports:
        x1 = jnp.einsum("ncvl,vw->ncwl", x, a)
        out.append(x1)
        for _ in range(2, order + 1):
            x2 = jnp.einsum("ncvl,vw->ncwl", x1, a)
            out.append(x2)
            x1 = x2
    return jnp.concatenate(out, axis=1)


if __name__ == "__main__":
    key = jax.random.PRNGKey(0)
    k_x, k_a = jax.random.split(key)

    N, C, V, L = 2, 4, 16, 8           # batch, channels, nodes, seq
    support_len, order = 3, 2          # module defaults

    x = jax.random.normal(k_x, (N, C, V, L), dtype=jnp.float32)
    a_keys = jax.random.split(k_a, support_len)
    supports = tuple(
        jax.nn.softmax(jax.random.normal(k, (V, V), dtype=jnp.float32), axis=-1)
        for k in a_keys
    )

    h = gcn_forward(x, supports, order=order)
    h = jax.block_until_ready(h)

    h_ref = gcn_reference(x, supports, order=order)
    assert h.shape == (N, C * (1 + support_len * order), V, L), h.shape
    assert jnp.allclose(h, h_ref, atol=1e-4, rtol=1e-4), "mismatch vs reference"

    print("KERNEL_OK")
</pallas_src>

<mosaic_0001>
module attributes {stable_mosaic.version = 11 : i64} {
  func.func @_gcn_fused_kernel(%arg0: i32, %arg1: memref<112x16xf32, #tpu.memory_space<vmem>>, %arg2: memref<16x128xf32, #tpu.memory_space<vmem>>, %arg3: memref<112x128xf32, #tpu.memory_space<vmem>>) attributes {dimension_semantics = [#tpu.dimension_semantics<parallel>], iteration_bounds = array<i64: 1>, scalar_prefetch = 0 : i64, scratch_operands = 0 : i64, tpu.core_type = #tpu.core_type<tc>, window_params = [{pipeline_mode = #tpu.pipeline_mode<synchronous>, transform_indices = @transform_0, window_bounds = array<i64: 112, 16>}, {transform_indices = @transform_1, window_bounds = array<i64: 16, 128>}, {transform_indices = @transform_2, window_bounds = array<i64: 112, 128>}]} {
    %c0 = arith.constant 0 : index
    %c0_0 = arith.constant 0 : index
    %0 = vector.load %arg1[%c0, %c0_0] : memref<112x16xf32, #tpu.memory_space<vmem>>, vector<112x16xf32>
    %c0_1 = arith.constant 0 : index
    %c0_2 = arith.constant 0 : index
    %1 = vector.load %arg2[%c0_1, %c0_2] : memref<16x128xf32, #tpu.memory_space<vmem>>, vector<16x128xf32>
    %cst = arith.constant dense<0.000000e+00> : vector<112x128xf32>
    %2 = tpu.matmul %0, %1, %cst {dimension_numbers = #tpu.dot_dimension_numbers<[1], [0], [0], [1], [0, 0, 1, 1], [], []>} : vector<112x16xf32>, vector<16x128xf32>, vector<112x128xf32> -> vector<112x128xf32>
    %c0_3 = arith.constant 0 : index
    %c0_4 = arith.constant 0 : index
    %3 = vector.load %arg3[%c0_3, %c0_4] : memref<112x128xf32, #tpu.memory_space<vmem>>, vector<112x128xf32>
    tpu.vector_store %arg3[%c0_3, %c0_4], %2 {strides = array<i32>} : memref<112x128xf32, #tpu.memory_space<vmem>>, vector<112x128xf32>,
    return
  }
  func.func @transform_0(%arg0: i32) -> (i32, i32) {
    %c0_i32 = arith.constant 0 : i32
    %c0_i32_0 = arith.constant 0 : i32
    %c0_i32_1 = arith.constant 0 : i32
    return %c0_i32, %c0_i32_0 : i32, i32
  }
  func.func @transform_1(%arg0: i32) -> (i32, i32) {
    %c0_i32 = arith.constant 0 : i32
    %c0_i32_0 = arith.constant 0 : i32
    return %c0_i32, %arg0 : i32, i32
  }
  func.func @transform_2(%arg0: i32) -> (i32, i32) {
    %c0_i32 = arith.constant 0 : i32
    %c0_i32_0 = arith.constant 0 : i32
    return %c0_i32, %arg0 : i32, i32
  }
}

</mosaic_0001>

<llo_original>
// kernel: gcn_forward.1
$region0: #{gcn_forward.1}
  #allocation0 [shape = 'u32[]', space=smem, size = 0x4, offset = 0x4, fixed_abs, tag = 'smem constant byte address 0x4 - core index']
  #allocation1 [shape = 'u32[144,128]{1,0:T(1,128)}', space=vmem, size = 0x12000, scoped, tag = 'internal scratch']
  %s0 = inlined_call_operand.vmem [shape: f32[112,16], index: 0, kind: input, shape index: {}]
  %s1 = inlined_call_operand.vmem [shape: f32[16,128], index: 1, kind: input, shape index: {}]
  %s2 = inlined_call_operand.vmem [shape: f32[112,128], index: 2, kind: output, shape index: {}]
  %s3 = sld [smem:[#allocation0]]
  $region18: #{gcn_forward.1} parent=0
    _
  %s5 = ssub.s32 1, %s3
  %s6 = scalar_select 0, %s5, %s3
  // Predicated region
  $region2: #{gcn_forward.1} parent=0 // pred_check
    _
  $region3: #{gcn_forward.1} parent=0 // pred_check_branch
    %8 = sbr.rel (0) target = $region5
  $region4: #{gcn_forward.1} parent=0 // pred_region
    _
  $region5: #{gcn_forward.1} parent=0 // pred_fallthru
    _
  // Predicated region
  $region6: #{gcn_forward.1} parent=0 // pred_check
    _
  $region7: #{gcn_forward.1} parent=0 // pred_check_branch
    %10 = sbr.rel (0) target = $region9
  $region8: #{gcn_forward.1} parent=0 // pred_region
    _
  $region9: #{gcn_forward.1} parent=0 // pred_fallthru
    _
  %v11 = vld [vmem:[%s0] sm:$0xff]
  %v12 = vld [vmem:[%s0 + $0x8] sm:$0xff]
  %v13 = vld [vmem:[%s0 + $0x10] sm:$0xff]
  %v14 = vld [vmem:[%s0 + $0x18] sm:$0xff]
  %v15 = vld [vmem:[%s0 + $0x20] sm:$0xff]
  %v16 = vld [vmem:[%s0 + $0x28] sm:$0xff]
  %v17 = vld [vmem:[%s0 + $0x30] sm:$0xff]
  %v18 = vld [vmem:[%s0 + $0x38] sm:$0xff]
  %v19 = vld [vmem:[%s0 + $0x40] sm:$0xff]
  %v20 = vld [vmem:[%s0 + $0x48] sm:$0xff]
  %v21 = vld [vmem:[%s0 + $0x50] sm:$0xff]
  %v22 = vld [vmem:[%s0 + $0x58] sm:$0xff]
  %v23 = vld [vmem:[%s0 + $0x60] sm:$0xff]
  %v24 = vld [vmem:[%s0 + $0x68] sm:$0xff]
  %v25 = vld [vmem:[%s1] sm:$0xff]
  %v26 = vld [vmem:[%s1 + $0x8] sm:$0xff]
  %vm27 = vcmask 130048
  %v29 = vsel %vm27, %v11, 0
  %v32 = vsel %vm27, %v12, 0
  %v35 = vsel %vm27, %v13, 0
  %v38 = vsel %vm27, %v14, 0
  %v41 = vsel %vm27, %v15, 0
  %v44 = vsel %vm27, %v16, 0
  %v47 = vsel %vm27, %v17, 0
  %v50 = vsel %vm27, %v18, 0
  %v53 = vsel %vm27, %v19, 0
  %v56 = vsel %vm27, %v20, 0
  %v59 = vsel %vm27, %v21, 0
  %v62 = vsel %vm27, %v22, 0
  %v65 = vsel %vm27, %v23, 0
  %v68 = vsel %vm27, %v24, 0
  %70 = vmatprep.subr.mxu0 0.0
  %71 = vmatpush1.msra.mxu0 %v25
  %72 = vmatprep.subr.mxu0 0.0
  %73 = vmatpush1.msra.mxu0 %v26
  %74 = vmatprep.subr.mxu0 0.0
  %75 = vmatpush1.msra.mxu0 0.0
  %76 = vmatprep.subr.mxu0 0.0
  %77 = vmatpush1.msra.mxu0 0.0
  %78 = vmatprep.subr.mxu0 0.0
  %79 = vmatpush1.msra.mxu0 0.0
  %80 = vmatprep.subr.mxu0 0.0
  %81 = vmatpush1.msra.mxu0 0.0
  %82 = vmatprep.subr.mxu0 0.0
  %83 = vmatpush1.msra.mxu0 0.0
  %84 = vmatprep.subr.mxu0 0.0
  %85 = vmatpush1.msra.mxu0 0.0
  %86 = vmatprep.subr.mxu0 0.0
  %87 = vmatpush1.msra.mxu0 0.0
  %88 = vmatprep.subr.mxu0 0.0
  %89 = vmatpush1.msra.mxu0 0.0
  %90 = vmatprep.subr.mxu0 0.0
  %91 = vmatpush1.msra.mxu0 0.0
  %92 = vmatprep.subr.mxu0 0.0
  %93 = vmatpush1.msra.mxu0 0.0
  %94 = vmatprep.subr.mxu0 0.0
  %95 = vmatpush1.msra.mxu0 0.0
  %96 = vmatprep.subr.mxu0 0.0
  %97 = vmatpush1.msra.mxu0 0.0
  %98 = vmatprep.subr.mxu0 0.0
  %99 = vmatpush1.msra.mxu0 0.0
  %100 = vmatprep.subr.mxu0 0.0
  %101 = vmatpush1.msra.mxu0 0.0
  %102 = vmatprep.subr.mxu0 0.0
  %103 = vmatpush1.msra.mxu0 0.0
  %104 = vmatprep.subr.mxu0 0.0
  %105 = vmatpush1.msra.mxu0 0.0
  %106 = vmatprep.subr.mxu0 0.0
  %107 = vmatpush1.msra.mxu0 0.0
  %108 = vmatprep.subr.mxu0 0.0
  %109 = vmatpush1.msra.mxu0 0.0
  %110 = vmatprep.subr.mxu0 0.0
  %111 = vmatpush1.msra.mxu0 0.0
  %112 = vmatprep.subr.mxu0 0.0
  %113 = vmatpush1.msra.mxu0 0.0
  %114 = vmatprep.subr.mxu0 0.0
  %115 = vmatpush1.msra.mxu0 0.0
  %116 = vmatprep.subr.mxu0 0.0
  %117 = vmatpush1.msra.mxu0 0.0
  %118 = vmatprep.subr.mxu0 0.0
  %119 = vmatpush1.msra.mxu0 0.0
  %120 = vmatprep.subr.mxu0 0.0
  %121 = vmatpush1.msra.mxu0 0.0
  %122 = vmatprep.subr.mxu0 0.0
  %123 = vmatpush1.msra.mxu0 0.0
  %124 = vmatprep.subr.mxu0 0.0
  %125 = vmatpush1.msra.mxu0 0.0
  %126 = vmatprep.subr.mxu0 0.0
  %127 = vmatpush1.msra.mxu0 0.0
  %128 = vmatprep.subr.mxu0 0.0
  %129 = vmatpush1.msra.mxu0 0.0
  %130 = vmatprep.subr.mxu0 0.0
  %131 = vmatpush1.msra.mxu0 0.0
  %132 = vmatprep.subr.mxu0 0.0
  %133 = vmatpush1.msra.mxu0 0.0
  %134 = vmatprep.mubr.f32.mxu0 0.0
  %135 = vmatmul.mubr.f32.gmra.mrb[0].mxu0 %v29
  %v136 = vpop.f32.mrb[0].mxu0
  %v137 = vadd.f32 0.0, %v136
  %v138 = vpop.f32.mrb[0].mxu0
  %139 = vmatprep.mubr.f32.mxu0 0.0
  %140 = vmatmul.mubr.f32.gmra.mrb[0].mxu0 %v32
  %v141 = vpop.f32.mrb[0].mxu0
  %v142 = vadd.f32 0.0, %v141
  %v143 = vpop.f32.mrb[0].mxu0
  %144 = vmatprep.mubr.f32.mxu0 0.0
  %145 = vmatmul.mubr.f32.gmra.mrb[0].mxu0 %v35
  %v146 = vpop.f32.mrb[0].mxu0
  %v147 = vadd.f32 0.0, %v146
  %v148 = vpop.f32.mrb[0].mxu0
  %149 = vmatprep.mubr.f32.mxu0 0.0
  %150 = vmatmul.mubr.f32.gmra.mrb[0].mxu0 %v38
  %v151 = vpop.f32.mrb[0].mxu0
  %v152 = vadd.f32 0.0, %v151
  %v153 = vpop.f32.mrb[0].mxu0
  %154 = vmatprep.mubr.f32.mxu0 0.0
  %155 = vmatmul.mubr.f32.gmra.mrb[0].mxu0 %v41
  %v156 = vpop.f32.mrb[0].mxu0
  %v157 = vadd.f32 0.0, %v156
  %v158 = vpop.f32.mrb[0].mxu0
  %159 = vmatprep.mubr.f32.mxu0 0.0
  %160 = vmatmul.mubr.f32.gmra.mrb[0].mxu0 %v44
  %v161 = vpop.f32.mrb[0].mxu0
  %v162 = vadd.f32 0.0, %v161
  %v163 = vpop.f32.mrb[0].mxu0
  %164 = vmatprep.mubr.f32.mxu0 0.0
  %165 = vmatmul.mubr.f32.gmra.mrb[0].mxu0 %v47
  %v166 = vpop.f32.mrb[0].mxu0
  %v167 = vadd.f32 0.0, %v166
  %v168 = vpop.f32.mrb[0].mxu0
  %169 = vmatprep.mubr.f32.mxu0 0.0
  %170 = vmatmul.mubr.f32.gmra.mrb[0].mxu0 %v50
  %v171 = vpop.f32.mrb[0].mxu0
  %v172 = vadd.f32 0.0, %v171
  %v173 = vpop.f32.mrb[0].mxu0
  %174 = vmatprep.mubr.f32.mxu0 0.0
  %175 = vmatmul.mubr.f32.gmra.mrb[0].mxu0 %v53
  %v176 = vpop.f32.mrb[0].mxu0
  %v177 = vadd.f32 0.0, %v176
  %v178 = vpop.f32.mrb[0].mxu0
  %179 = vmatprep.mubr.f32.mxu0 0.0
  %180 = vmatmul.mubr.f32.gmra.mrb[0].mxu0 %v56
  %v181 = vpop.f32.mrb[0].mxu0
  %v182 = vadd.f32 0.0, %v181
  %v183 = vpop.f32.mrb[0].mxu0
  %184 = vmatprep.mubr.f32.mxu0 0.0
  %185 = vmatmul.mubr.f32.gmra.mrb[0].mxu0 %v59
  %v186 = vpop.f32.mrb[0].mxu0
  %v187 = vadd.f32 0.0, %v186
  %v188 = vpop.f32.mrb[0].mxu0
  %189 = vmatprep.mubr.f32.mxu0 0.0
  %190 = vmatmul.mubr.f32.gmra.mrb[0].mxu0 %v62
  %v191 = vpop.f32.mrb[0].mxu0
  %v192 = vadd.f32 0.0, %v191
  %v193 = vpop.f32.mrb[0].mxu0
  %194 = vmatprep.mubr.f32.mxu0 0.0
  %195 = vmatmul.mubr.f32.gmra.mrb[0].mxu0 %v65
  %v196 = vpop.f32.mrb[0].mxu0
  %v197 = vadd.f32 0.0, %v196
  %v198 = vpop.f32.mrb[0].mxu0
  %199 = vmatprep.mubr.f32.mxu0 0.0
  %200 = vmatmul.mubr.f32.gmra.mrb[0].mxu0 %v68
  %v201 = vpop.f32.mrb[0].mxu0
  %v202 = vadd.f32 0.0, %v201
  %v203 = vpop.f32.mrb[0].mxu0
  %204 = vdwg.mxu0
  %205 = vst [vmem:[%s2] sm:$0xff] %v137
  %206 = vst [vmem:[%s2 + $0x8] sm:$0xff] %v142
  %207 = vst [vmem:[%s2 + $0x10] sm:$0xff] %v147
  %208 = vst [vmem:[%s2 + $0x18] sm:$0xff] %v152
  %209 = vst [vmem:[%s2 + $0x20] sm:$0xff] %v157
  %210 = vst [vmem:[%s2 + $0x28] sm:$0xff] %v162
  %211 = vst [vmem:[%s2 + $0x30] sm:$0xff] %v167
  %212 = vst [vmem:[%s2 + $0x38] sm:$0xff] %v172
  %213 = vst [vmem:[%s2 + $0x40] sm:$0xff] %v177
  %214 = vst [vmem:[%s2 + $0x48] sm:$0xff] %v182
  %215 = vst [vmem:[%s2 + $0x50] sm:$0xff] %v187
  %216 = vst [vmem:[%s2 + $0x58] sm:$0xff] %v192
  %217 = vst [vmem:[%s2 + $0x60] sm:$0xff] %v197
  %218 = vst [vmem:[%s2 + $0x68] sm:$0xff] %v202
  // Predicated region
  $region10: #{gcn_forward.1} parent=0 // pred_check
    _
  $region11: #{gcn_forward.1} parent=0 // pred_check_branch
    %220 = sbr.rel (0) target = $region13
  $region12: #{gcn_forward.1} parent=0 // pred_region
    _
  $region13: #{gcn_forward.1} parent=0 // pred_fallthru
    _
  // Predicated region
  $region14: #{gcn_forward.1} parent=0 // pred_check
    _
  $region15: #{gcn_forward.1} parent=0 // pred_check_branch
    %222 = sbr.rel (0) target = $region17
  $region16: #{gcn_forward.1} parent=0 // pred_region
    _
  $region17: #{gcn_forward.1} parent=0 // pred_fallthru
    _

</llo_original>
